<compile_context>
chip_gen: v6e
topology: v6e:2x2x1
jax: 0.10.0
libtpu: 0.0.40
codegen_flags: <defaults>
</compile_context>

<pallas_src>
import jax
import jax.numpy as jnp
from jax.experimental import pallas as pl
from jax.experimental.pallas import tpu as pltpu


def _transition_kernel(w_ref, b_ref, ph_ref, pw_ref, x_ref, o_ref):
    """One (batch, pooled-row-tile) grid step.

    w_ref : [C_out*C_in]         SMEM f32   1x1-conv weights (scalars)
    b_ref : [C_out]              SMEM f32   bias
    ph_ref: [TH, 2*TH]           VMEM f32   row-pair summing matrix (resident)
    pw_ref: [W, ww]              VMEM f32   column-pair summing matrix (resident)
    x_ref : [1, C_in, 2*TH, W]   VMEM       input tile (NCHW)
    o_ref : [1, C_out, TH, ww]   VMEM       output tile (NCHW)
    """
    c_in = x_ref.shape[1]
    c_out = o_ref.shape[1]

    ph = ph_ref[...]
    pw = pw_ref[...]

    # Fused 2x2 sum-pool per input channel: two tiny MXU matmuls
    # (row pairs, then column pairs), accumulated in f32.
    pooled = []
    for ci in range(c_in):
        xc = x_ref[0, ci].astype(jnp.float32)                        # (2*TH, W)
        rows = jnp.dot(ph, xc, preferred_element_type=jnp.float32)   # (TH, W)
        pooled.append(
            jnp.dot(rows, pw, preferred_element_type=jnp.float32))   # (TH, ww)

    # 1x1 conv == weighted sum over input channels. Channels are tiny here,
    # so do it on the VPU with scalar weights read from SMEM. The avg-pool
    # normalization (0.25) is folded in once per output channel.
    for co in range(c_out):
        acc = None
        for ci in range(c_in):
            term = w_ref[co * c_in + ci] * pooled[ci]
            acc = term if acc is None else acc + term
        o_ref[0, co, :, :] = (0.25 * acc + b_ref[co]).astype(o_ref.dtype)


def _pick_row_tile(hh, c_in, w_even, itemsize, budget_bytes=2 * 1024 * 1024):
    """Pooled-row tile TH: full extent if the input tile fits the budget,
    else the largest multiple of 8 that divides hh and fits."""
    def tile_bytes(t):
        return c_in * (2 * t) * w_even * itemsize
    if tile_bytes(hh) <= budget_bytes:
        return hh
    cands = [t for t in range(8, hh, 8)
             if hh % t == 0 and tile_bytes(t) <= budget_bytes]
    return max(cands) if cands else hh


@jax.jit
def transition_layer(x_nchw, weight, bias):
    """_TransitionLayer forward.

    x_nchw: [N, C_in, H, W]; weight: [C_out, C_in, 1, 1]; bias: [C_out].
    Returns [N, C_out, H//2, W//2] (NCHW), matching conv(1x1) -> avgpool(2,2).
    """
    n, c_in, h, w = x_nchw.shape
    c_out = weight.shape[0]
    hh, ww = h // 2, w // 2
    h_even, w_even = 2 * hh, 2 * ww
    dtype = x_nchw.dtype
    itemsize = jnp.dtype(dtype).itemsize

    # PyTorch AvgPool2d(2,2) floors odd spatial dims: crop (no-op when even).
    if (h_even, w_even) != (h, w):
        x_nchw = x_nchw[:, :, :h_even, :w_even]

    th = _pick_row_tile(hh, c_in, w_even, itemsize)

    # Static 0/1 pair-summing matrices (tiny, resident in VMEM).
    r = jnp.arange(th)[:, None]
    c = jnp.arange(2 * th)[None, :]
    ph = ((c == 2 * r) | (c == 2 * r + 1)).astype(jnp.float32)       # (TH, 2*TH)
    r2 = jnp.arange(w_even)[:, None]
    c2 = jnp.arange(ww)[None, :]
    pw = ((r2 == 2 * c2) | (r2 == 2 * c2 + 1)).astype(jnp.float32)   # (W, ww)

    # Conv weights/bias as scalars in SMEM (flat 1-D to avoid SMEM 2-D padding).
    w_flat = weight.reshape(-1).astype(jnp.float32)                  # (C_out*C_in,)
    b_vec = bias.astype(jnp.float32)                                 # (C_out,)

    # Grid: (batch, pooled-row tiles). Both independent -> "parallel" for
    # v7x megacore; at the test shapes this is 2 even steps.
    grid = (n, hh // th)

    flops = (2 * n * c_in * (hh * h_even * w_even + hh * w_even * ww)  # pool matmuls
             + 2 * n * hh * ww * c_in * c_out                          # 1x1 conv
             + n * hh * ww * c_out)                                    # bias add
    bytes_accessed = (n * c_in * h_even * w_even * itemsize            # read x
                      + n * c_out * hh * ww * itemsize                 # write out
                      + (w_flat.size + b_vec.size + ph.size + pw.size) * 4)

    out = pl.pallas_call(
        _transition_kernel,
        out_shape=jax.ShapeDtypeStruct((n, c_out, hh, ww), dtype),
        grid=grid,
        in_specs=[
            pl.BlockSpec(memory_space=pltpu.MemorySpace.SMEM),             # weights
            pl.BlockSpec(memory_space=pltpu.MemorySpace.SMEM),             # bias
            pl.BlockSpec((th, 2 * th), lambda b, t: (0, 0)),               # PH (resident)
            pl.BlockSpec((w_even, ww), lambda b, t: (0, 0)),               # PW (resident)
            pl.BlockSpec((1, c_in, 2 * th, w_even),
                         lambda b, t: (b, 0, t, 0)),                       # x tile (NCHW)
        ],
        out_specs=pl.BlockSpec((1, c_out, th, ww), lambda b, t: (b, 0, t, 0)),
        compiler_params=pltpu.CompilerParams(
            dimension_semantics=("parallel", "parallel"),
            vmem_limit_bytes=32 * 1024 * 1024,
        ),
        cost_estimate=pl.CostEstimate(
            flops=int(flops), transcendentals=0,
            bytes_accessed=int(bytes_accessed)),
    )(w_flat, b_vec, ph, pw, x_nchw)
    return out


def _reference(x_nchw, weight, bias):
    """Pure-JAX reference: 1x1 conv then 2x2 avg pool (NCHW), like PyTorch."""
    c_out = weight.shape[0]
    wm = weight.reshape(c_out, -1)
    y = jnp.einsum("oc,nchw->nohw", wm, x_nchw) + bias[None, :, None, None]
    n, _, h, w = y.shape
    y = y[:, :, : (h // 2) * 2, : (w // 2) * 2]
    y = y.reshape(n, c_out, h // 2, 2, w // 2, 2).mean(axis=(3, 5))
    return y


if __name__ == "__main__":
    key = jax.random.PRNGKey(0)
    k_x, k_w, k_b = jax.random.split(key, 3)

    # Small shapes consistent with the module: in_channels=4, compression=2.
    N, C_IN, H, W = 2, 4, 16, 16
    COMPRESSION = 2
    C_OUT = C_IN // COMPRESSION

    x = jax.random.normal(k_x, (N, C_IN, H, W), dtype=jnp.float32)

    # PyTorch Conv2d default init: U(-1/sqrt(fan_in), +1/sqrt(fan_in)).
    fan_in = C_IN * 1 * 1
    bound = 1.0 / (fan_in ** 0.5)
    weight = jax.random.uniform(k_w, (C_OUT, C_IN, 1, 1), jnp.float32, -bound, bound)
    bias = jax.random.uniform(k_b, (C_OUT,), jnp.float32, -bound, bound)

    out = transition_layer(x, weight, bias)
    out = jax.block_until_ready(out)

    ref = _reference(x, weight, bias)
    assert out.shape == (N, C_OUT, H // 2, W // 2), out.shape
    assert jnp.allclose(out, ref, atol=2e-5, rtol=2e-5), "mismatch vs reference"

    print("KERNEL_OK")
</pallas_src>

<mosaic_0001>
module attributes {stable_mosaic.version = 11 : i64} {
  func.func @_transition_kernel(%arg0: i32, %arg1: i32, %arg2: memref<8xf32, #tpu.memory_space<smem>>, %arg3: memref<2xf32, #tpu.memory_space<smem>>, %arg4: memref<8x16xf32, #tpu.memory_space<vmem>>, %arg5: memref<16x8xf32, #tpu.memory_space<vmem>>, %arg6: memref<1x4x16x16xf32, #tpu.memory_space<vmem>>, %arg7: memref<1x2x8x8xf32, #tpu.memory_space<vmem>>) attributes {dimension_semantics = [#tpu.dimension_semantics<parallel>, #tpu.dimension_semantics<parallel>], iteration_bounds = array<i64: 2, 1>, scalar_prefetch = 0 : i64, scratch_operands = 0 : i64, tpu.core_type = #tpu.core_type<tc>, window_params = [{transform_indices = @transform_0, window_bounds = array<i64: 8>}, {transform_indices = @transform_1, window_bounds = array<i64: 2>}, {pipeline_mode = #tpu.pipeline_mode<synchronous>, transform_indices = @transform_2, window_bounds = array<i64: 8, 16>}, {pipeline_mode = #tpu.pipeline_mode<synchronous>, transform_indices = @transform_3, window_bounds = array<i64: 16, 8>}, {transform_indices = @transform_4, window_bounds = array<i64: 1, 4, 16, 16>}, {transform_indices = @transform_5, window_bounds = array<i64: 1, 2, 8, 8>}]} {
    %c0 = arith.constant 0 : index
    %c0_0 = arith.constant 0 : index
    %0 = vector.load %arg4[%c0, %c0_0] : memref<8x16xf32, #tpu.memory_space<vmem>>, vector<8x16xf32>
    %c0_1 = arith.constant 0 : index
    %c0_2 = arith.constant 0 : index
    %1 = vector.load %arg5[%c0_1, %c0_2] : memref<16x8xf32, #tpu.memory_space<vmem>>, vector<16x8xf32>
    %c0_3 = arith.constant 0 : index
    %c0_4 = arith.constant 0 : index
    %c0_5 = arith.constant 0 : index
    %c0_6 = arith.constant 0 : index
    %2 = vector.load %arg6[%c0_3, %c0_4, %c0_5, %c0_6] : memref<1x4x16x16xf32, #tpu.memory_space<vmem>>, vector<1x1x16x16xf32>
    %3 = vector.shape_cast %2 : vector<1x1x16x16xf32> to vector<16x16xf32>
    %cst = arith.constant dense<0.000000e+00> : vector<8x16xf32>
    %4 = tpu.matmul %0, %3, %cst {dimension_numbers = #tpu.dot_dimension_numbers<[1], [0], [0], [1], [0, 0, 1, 1], [], []>} : vector<8x16xf32>, vector<16x16xf32>, vector<8x16xf32> -> vector<8x16xf32>
    %cst_7 = arith.constant dense<0.000000e+00> : vector<8x8xf32>
    %5 = tpu.matmul %4, %1, %cst_7 {dimension_numbers = #tpu.dot_dimension_numbers<[1], [0], [0], [1], [0, 0, 1, 1], [], []>} : vector<8x16xf32>, vector<16x8xf32>, vector<8x8xf32> -> vector<8x8xf32>
    %c0_8 = arith.constant 0 : index
    %c1 = arith.constant 1 : index
    %c0_9 = arith.constant 0 : index
    %c0_10 = arith.constant 0 : index
    %6 = vector.load %arg6[%c0_8, %c1, %c0_9, %c0_10] : memref<1x4x16x16xf32, #tpu.memory_space<vmem>>, vector<1x1x16x16xf32>
    %7 = vector.shape_cast %6 : vector<1x1x16x16xf32> to vector<16x16xf32>
    %cst_11 = arith.constant dense<0.000000e+00> : vector<8x16xf32>
    %8 = tpu.matmul %0, %7, %cst_11 {dimension_numbers = #tpu.dot_dimension_numbers<[1], [0], [0], [1], [0, 0, 1, 1], [], []>} : vector<8x16xf32>, vector<16x16xf32>, vector<8x16xf32> -> vector<8x16xf32>
    %cst_12 = arith.constant dense<0.000000e+00> : vector<8x8xf32>
    %9 = tpu.matmul %8, %1, %cst_12 {dimension_numbers = #tpu.dot_dimension_numbers<[1], [0], [0], [1], [0, 0, 1, 1], [], []>} : vector<8x16xf32>, vector<16x8xf32>, vector<8x8xf32> -> vector<8x8xf32>
    %c0_13 = arith.constant 0 : index
    %c2 = arith.constant 2 : index
    %c0_14 = arith.constant 0 : index
    %c0_15 = arith.constant 0 : index
    %10 = vector.load %arg6[%c0_13, %c2, %c0_14, %c0_15] : memref<1x4x16x16xf32, #tpu.memory_space<vmem>>, vector<1x1x16x16xf32>
    %11 = vector.shape_cast %10 : vector<1x1x16x16xf32> to vector<16x16xf32>
    %cst_16 = arith.constant dense<0.000000e+00> : vector<8x16xf32>
    %12 = tpu.matmul %0, %11, %cst_16 {dimension_numbers = #tpu.dot_dimension_numbers<[1], [0], [0], [1], [0, 0, 1, 1], [], []>} : vector<8x16xf32>, vector<16x16xf32>, vector<8x16xf32> -> vector<8x16xf32>
    %cst_17 = arith.constant dense<0.000000e+00> : vector<8x8xf32>
    %13 = tpu.matmul %12, %1, %cst_17 {dimension_numbers = #tpu.dot_dimension_numbers<[1], [0], [0], [1], [0, 0, 1, 1], [], []>} : vector<8x16xf32>, vector<16x8xf32>, vector<8x8xf32> -> vector<8x8xf32>
    %c0_18 = arith.constant 0 : index
    %c3 = arith.constant 3 : index
    %c0_19 = arith.constant 0 : index
    %c0_20 = arith.constant 0 : index
    %14 = vector.load %arg6[%c0_18, %c3, %c0_19, %c0_20] : memref<1x4x16x16xf32, #tpu.memory_space<vmem>>, vector<1x1x16x16xf32>
    %15 = vector.shape_cast %14 : vector<1x1x16x16xf32> to vector<16x16xf32>
    %cst_21 = arith.constant dense<0.000000e+00> : vector<8x16xf32>
    %16 = tpu.matmul %0, %15, %cst_21 {dimension_numbers = #tpu.dot_dimension_numbers<[1], [0], [0], [1], [0, 0, 1, 1], [], []>} : vector<8x16xf32>, vector<16x16xf32>, vector<8x16xf32> -> vector<8x16xf32>
    %cst_22 = arith.constant dense<0.000000e+00> : vector<8x8xf32>
    %17 = tpu.matmul %16, %1, %cst_22 {dimension_numbers = #tpu.dot_dimension_numbers<[1], [0], [0], [1], [0, 0, 1, 1], [], []>} : vector<8x16xf32>, vector<16x8xf32>, vector<8x8xf32> -> vector<8x8xf32>
    %c0_23 = arith.constant 0 : index
    %18 = memref.load %arg2[%c0_23] : memref<8xf32, #tpu.memory_space<smem>>
    %19 = vector.broadcast %18 : f32 to vector<8x8xf32>
    %20 = arith.mulf %19, %5 : vector<8x8xf32>
    %c1_24 = arith.constant 1 : index
    %21 = memref.load %arg2[%c1_24] : memref<8xf32, #tpu.memory_space<smem>>
    %22 = vector.broadcast %21 : f32 to vector<8x8xf32>
    %23 = arith.mulf %22, %9 : vector<8x8xf32>
    %24 = arith.addf %20, %23 : vector<8x8xf32>
    %c2_25 = arith.constant 2 : index
    %25 = memref.load %arg2[%c2_25] : memref<8xf32, #tpu.memory_space<smem>>
    %26 = vector.broadcast %25 : f32 to vector<8x8xf32>
    %27 = arith.mulf %26, %13 : vector<8x8xf32>
    %28 = arith.addf %24, %27 : vector<8x8xf32>
    %c3_26 = arith.constant 3 : index
    %29 = memref.load %arg2[%c3_26] : memref<8xf32, #tpu.memory_space<smem>>
    %30 = vector.broadcast %29 : f32 to vector<8x8xf32>
    %31 = arith.mulf %30, %17 : vector<8x8xf32>
    %32 = arith.addf %28, %31 : vector<8x8xf32>
    %cst_27 = arith.constant 2.500000e-01 : f32
    %33 = vector.broadcast %cst_27 : f32 to vector<8x8xf32>
    %34 = arith.mulf %33, %32 : vector<8x8xf32>
    %c0_28 = arith.constant 0 : index
    %35 = memref.load %arg3[%c0_28] : memref<2xf32, #tpu.memory_space<smem>>
    %36 = vector.broadcast %35 : f32 to vector<8x8xf32>
    %37 = arith.addf %34, %36 : vector<8x8xf32>
    %c0_29 = arith.constant 0 : index
    %c0_30 = arith.constant 0 : index
    %c0_31 = arith.constant 0 : index
    %c0_32 = arith.constant 0 : index
    %38 = vector.load %arg7[%c0_29, %c0_30, %c0_31, %c0_32] : memref<1x2x8x8xf32, #tpu.memory_space<vmem>>, vector<1x1x8x8xf32>
    %39 = vector.shape_cast %38 : vector<1x1x8x8xf32> to vector<8x8xf32>
    %40 = vector.shape_cast %37 : vector<8x8xf32> to vector<1x1x8x8xf32>
    tpu.vector_store %arg7[%c0_29, %c0_30, %c0_31, %c0_32], %40 {strides = array<i32>} : memref<1x2x8x8xf32, #tpu.memory_space<vmem>>, vector<1x1x8x8xf32>,
    %c4 = arith.constant 4 : index
    %41 = memref.load %arg2[%c4] : memref<8xf32, #tpu.memory_space<smem>>
    %42 = vector.broadcast %41 : f32 to vector<8x8xf32>
    %43 = arith.mulf %42, %5 : vector<8x8xf32>
    %c5 = arith.constant 5 : index
    %44 = memref.load %arg2[%c5] : memref<8xf32, #tpu.memory_space<smem>>
    %45 = vector.broadcast %44 : f32 to vector<8x8xf32>
    %46 = arith.mulf %45, %9 : vector<8x8xf32>
    %47 = arith.addf %43, %46 : vector<8x8xf32>
    %c6 = arith.constant 6 : index
    %48 = memref.load %arg2[%c6] : memref<8xf32, #tpu.memory_space<smem>>
    %49 = vector.broadcast %48 : f32 to vector<8x8xf32>
    %50 = arith.mulf %49, %13 : vector<8x8xf32>
    %51 = arith.addf %47, %50 : vector<8x8xf32>
    %c7 = arith.constant 7 : index
    %52 = memref.load %arg2[%c7] : memref<8xf32, #tpu.memory_space<smem>>
    %53 = vector.broadcast %52 : f32 to vector<8x8xf32>
    %54 = arith.mulf %53, %17 : vector<8x8xf32>
    %55 = arith.addf %51, %54 : vector<8x8xf32>
    %cst_33 = arith.constant 2.500000e-01 : f32
    %56 = vector.broadcast %cst_33 : f32 to vector<8x8xf32>
    %57 = arith.mulf %56, %55 : vector<8x8xf32>
    %c1_34 = arith.constant 1 : index
    %58 = memref.load %arg3[%c1_34] : memref<2xf32, #tpu.memory_space<smem>>
    %59 = vector.broadcast %58 : f32 to vector<8x8xf32>
    %60 = arith.addf %57, %59 : vector<8x8xf32>
    %c0_35 = arith.constant 0 : index
    %c1_36 = arith.constant 1 : index
    %c0_37 = arith.constant 0 : index
    %c0_38 = arith.constant 0 : index
    %61 = vector.load %arg7[%c0_35, %c1_36, %c0_37, %c0_38] : memref<1x2x8x8xf32, #tpu.memory_space<vmem>>, vector<1x1x8x8xf32>
    %62 = vector.shape_cast %61 : vector<1x1x8x8xf32> to vector<8x8xf32>
    %63 = vector.shape_cast %60 : vector<8x8xf32> to vector<1x1x8x8xf32>
    tpu.vector_store %arg7[%c0_35, %c1_36, %c0_37, %c0_38], %63 {strides = array<i32>} : memref<1x2x8x8xf32, #tpu.memory_space<vmem>>, vector<1x1x8x8xf32>,
    return
  }
  func.func @transform_0(%arg0: i32, %arg1: i32) -> i32 {
    %c0_i32 = arith.constant 0 : i32
    %c0_i32_0 = arith.constant 0 : i32
    return %c0_i32 : i32
  }
  func.func @transform_1(%arg0: i32, %arg1: i32) -> i32 {
    %c0_i32 = arith.constant 0 : i32
    %c0_i32_0 = arith.constant 0 : i32
    return %c0_i32 : i32
  }
  func.func @transform_2(%arg0: i32, %arg1: i32) -> (i32, i32) {
    %c0_i32 = arith.constant 0 : i32
    %c0_i32_0 = arith.constant 0 : i32
    %c0_i32_1 = arith.constant 0 : i32
    return %c0_i32, %c0_i32_0 : i32, i32
  }
  func.func @transform_3(%arg0: i32, %arg1: i32) -> (i32, i32) {
    %c0_i32 = arith.constant 0 : i32
    %c0_i32_0 = arith.constant 0 : i32
    %c0_i32_1 = arith.constant 0 : i32
    return %c0_i32, %c0_i32_0 : i32, i32
  }
  func.func @transform_4(%arg0: i32, %arg1: i32) -> (i32, i32, i32, i32) {
    %c0_i32 = arith.constant 0 : i32
    %c0_i32_0 = arith.constant 0 : i32
    %c0_i32_1 = arith.constant 0 : i32
    return %arg0, %c0_i32, %arg1, %c0_i32_0 : i32, i32, i32, i32
  }
  func.func @transform_5(%arg0: i32, %arg1: i32) -> (i32, i32, i32, i32) {
    %c0_i32 = arith.constant 0 : i32
    %c0_i32_0 = arith.constant 0 : i32
    %c0_i32_1 = arith.constant 0 : i32
    return %arg0, %c0_i32, %arg1, %c0_i32_0 : i32, i32, i32, i32
  }
}

</mosaic_0001>

<llo_original>
// kernel: transition_layer.1
$region0: #{transition_layer.1}
  #allocation0 [shape = 'u32[]', space=smem, size = 0x4, offset = 0x4, fixed_abs, tag = 'smem constant byte address 0x4 - core index']
  #allocation1 [shape = 'u32[144,128]{1,0:T(1,128)}', space=vmem, size = 0x12000, scoped, tag = 'internal scratch']
  %s0 = inlined_call_operand.vmem [shape: f32[8], index: 0, kind: input, shape index: {}]
  %s1 = inlined_call_operand.vmem [shape: f32[2], index: 1, kind: input, shape index: {}]
  %s2 = inlined_call_operand.vmem [shape: f32[8,16], index: 2, kind: input, shape index: {}]
  %s3 = inlined_call_operand.vmem [shape: f32[16,8], index: 3, kind: input, shape index: {}]
  %s4 = inlined_call_operand.hbm [shape: f32[2,4,16,16], index: 4, kind: input, shape index: {}]
  %s5 = inlined_call_operand.hbm [shape: f32[2,2,8,8], index: 5, kind: output, shape index: {}]
  %s6 = sld [smem:[#allocation0]]
  $region65: #{transition_layer.1} parent=0
    _
  %s8 = ssub.s32 1, %s6
  %s9 = scalar_select 0, %s8, %s6
  $region1: #{transition_layer.1} parent=0
    #allocation2 [shape = 'u8[512]{0}', space=smem, size = 0x200, scoped, tag = 'input window, operand 0, single buffered']
    #allocation3 [shape = 's32[2]{0}', space=sflag, size = 0x8, scoped, tag = 'scoped memory for transition_layer.1']
    #allocation4 [shape = 's32[2]{0}', space=sflag, size = 0x8, scoped, tag = 'scoped memory for transition_layer.1']
    #allocation5 [shape = 's32[2]{0}', space=sflag, size = 0x8, scoped, tag = 'scoped memory for transition_layer.1']
    #allocation6 [shape = 'u8[512]{0}', space=smem, size = 0x200, scoped, tag = 'input window, operand 1, single buffered']
    #allocation7 [shape = 's32[1]{0}', space=sflag, size = 0x4, scoped, tag = 'scoped memory for transition_layer.1']
    #allocation8 [shape = 'u8[65536]{0}', space=vmem, size = 0x10000, scoped, tag = 'input window, operand 4']
    #allocation9 [shape = 'u8[16384]{0}', space=vmem, size = 0x4000, scoped, tag = 'output window, operand 0']
    %10 = vsyncpa [#allocation5], 0
    %11 = vsyncpa [#allocation7], 0
    %12 = vsyncpa [#allocation3], 0
    %s13 = scalar_lea.sflag [#allocation3], 1
    %14 = vsyncpa %s13, 0
    %15 = vsyncpa [#allocation4], 0
    %s16 = scalar_lea.sflag [#allocation4], 1
    %17 = vsyncpa %s16, 0
    loop: start=0, step=1, limit=4
    $region2: #{transition_layer.1} parent=1 // loop_pre_header
      _
    $region3: #{transition_layer.1} parent=1 // loop_header
      %s19 = sphi 0, %s23
      %p20 = scmp.ge.s32.totalorder %s19, 4
      %s26 = sphi 0, %s38
      %s27 = sphi 0, %s34
      %s28 = sphi 0, %s26
      %s29 = sphi 0, %s27
      %s30 = sphi 0, %s28
      %s31 = sphi 0, %s29
      %s39 = sphi 0, %s39
      %s41 = sphi 0, %s39
      %s42 = sphi 0, %s41
      %s56 = sphi 0, %s42
      %s60 = sphi 0, %s60
      %s62 = sphi 0, %s60
      %s63 = sphi 0, %s62
      %s77 = sphi 0, %s63
      %s81 = sphi 0, %s81
      %s83 = sphi 0, %s81
      %s84 = sphi 0, %s83
      %s98 = sphi 0, %s84
      %s102 = sphi 0, %s102
      %s104 = sphi 0, %s102
      %s105 = sphi 0, %s104
      %s119 = sphi 0, %s105
      %s127 = sphi 0, %s129
      %s130 = sphi 0, %s127
      %s131 = sphi 0, %s130
      %s147 = sphi 0, %s131
      %s155 = sphi 0, %s157
      %s158 = sphi 0, %s155
      %s159 = sphi 0, %s158
      %s175 = sphi 0, %s159
    $region4: #{transition_layer.1} parent=1 // loop_header_branch
      %22 = sbr.rel (%p20) target = $region8
    $region5: #{transition_layer.1} parent=1 // loop_body
      %s24 = ssub.s32 %s19, 1
      %s25 = ssub.s32 %s19, 2
      %s32 = sadd.s32 1, %s27
      %p33 = scmp.ge.s32.totalorder %s32, 1
      %s34 = scalar_select %p33, 0, %s32
      %s35 = sadd.s32 1, %s26
      %s36 = scalar_select %p33, %s35, %s26
      %p37 = scmp.ge.s32.totalorder %s36, 2
      %s38 = scalar_select %p37, 0, %s36
      %s40 = sadd.s32 %s39, 1
      %p43 = scmp.eq.s32.totalorder %s19, 1
      %p44 = scmp.ne.s32.totalorder %s39, %s41
      %p45 = scmp.eq.s32.totalorder %s19, 0
      %p46 = por %p44, %p45
      %p47 = scmp.ne.s32.totalorder %s39, %s41
      %p48 = scmp.eq.s32.totalorder %s24, 1
      %p49 = por %p47, %p48
      %p50 = scmp.ne.s32.totalorder %s41, %s42
      %p51 = scmp.eq.s32.totalorder %s24, 0
      %p52 = por %p50, %p51
      %p53 = scmp.ne.s32.totalorder %s41, %s42
      %p54 = scmp.eq.s32.totalorder %s25, 1
      %p55 = por %p53, %p54
      %p57 = scmp.ne.s32.totalorder %s42, %s56
      %p58 = scmp.eq.s32.totalorder %s25, 0
      %p59 = por %p57, %p58
      %s61 = sadd.s32 %s60, 1
      %p64 = scmp.eq.s32.totalorder %s19, 1
      %p65 = scmp.ne.s32.totalorder %s60, %s62
      %p66 = scmp.eq.s32.totalorder %s19, 0
      %p67 = por %p65, %p66
      %p68 = scmp.ne.s32.totalorder %s60, %s62
      %p69 = scmp.eq.s32.totalorder %s24, 1
      %p70 = por %p68, %p69
      %p71 = scmp.ne.s32.totalorder %s62, %s63
      %p72 = scmp.eq.s32.totalorder %s24, 0
      %p73 = por %p71, %p72
      %p74 = scmp.ne.s32.totalorder %s62, %s63
      %p75 = scmp.eq.s32.totalorder %s25, 1
      %p76 = por %p74, %p75
      %p78 = scmp.ne.s32.totalorder %s63, %s77
      %p79 = scmp.eq.s32.totalorder %s25, 0
      %p80 = por %p78, %p79
      %s82 = sadd.s32 %s81, 1
      %p85 = scmp.eq.s32.totalorder %s19, 1
      %p86 = scmp.ne.s32.totalorder %s81, %s83
      %p87 = scmp.eq.s32.totalorder %s19, 0
      %p88 = por %p86, %p87
      %p89 = scmp.ne.s32.totalorder %s81, %s83
      %p90 = scmp.eq.s32.totalorder %s24, 1
      %p91 = por %p89, %p90
      %p92 = scmp.ne.s32.totalorder %s83, %s84
      %p93 = scmp.eq.s32.totalorder %s24, 0
      %p94 = por %p92, %p93
      %p95 = scmp.ne.s32.totalorder %s83, %s84
      %p96 = scmp.eq.s32.totalorder %s25, 1
      %p97 = por %p95, %p96
      %p99 = scmp.ne.s32.totalorder %s84, %s98
      %p100 = scmp.eq.s32.totalorder %s25, 0
      %p101 = por %p99, %p100
      %s103 = sadd.s32 %s102, 1
      %p106 = scmp.eq.s32.totalorder %s19, 1
      %p107 = scmp.ne.s32.totalorder %s102, %s104
      %p108 = scmp.eq.s32.totalorder %s19, 0
      %p109 = por %p107, %p108
      %p110 = scmp.ne.s32.totalorder %s102, %s104
      %p111 = scmp.eq.s32.totalorder %s24, 1
      %p112 = por %p110, %p111
      %p113 = scmp.ne.s32.totalorder %s104, %s105
      %p114 = scmp.eq.s32.totalorder %s24, 0
      %p115 = por %p113, %p114
      %p116 = scmp.ne.s32.totalorder %s104, %s105
      %p117 = scmp.eq.s32.totalorder %s25, 1
      %p118 = por %p116, %p117
      %p120 = scmp.ne.s32.totalorder %s105, %s119
      %p121 = scmp.eq.s32.totalorder %s25, 0
      %p122 = por %p120, %p121
      %s123 = ssub.s32 %s26, %s38
      %s124 = ssub.s32 %s27, %s34
      %s125 = sor.u32 %s123, %s124
      %p126 = scmp.eq.s32.totalorder %s125, 0
      %s128 = sadd.s32 %s127, 1
      %s129 = scalar_select %p126, %s127, %s128
      %p132 = pneg %p126
      %p133 = scmp.eq.s32.totalorder %s19, 1
      %p134 = por %p132, %p133
      %p135 = scmp.ne.s32.totalorder %s127, %s130
      %p136 = scmp.eq.s32.totalorder %s19, 0
      %p137 = por %p135, %p136
      %p138 = scmp.ne.s32.totalorder %s127, %s130
      %p139 = scmp.eq.s32.totalorder %s24, 1
      %p140 = por %p138, %p139
      %p141 = scmp.ne.s32.totalorder %s130, %s131
      %p142 = scmp.eq.s32.totalorder %s24, 0
      %p143 = por %p141, %p142
      %p144 = scmp.ne.s32.totalorder %s130, %s131
      %p145 = scmp.eq.s32.totalorder %s25, 1
      %p146 = por %p144, %p145
      %p148 = scmp.ne.s32.totalorder %s131, %s147
      %p149 = scmp.eq.s32.totalorder %s25, 0
      %p150 = por %p148, %p149
      %s151 = ssub.s32 %s26, %s38
      %s152 = ssub.s32 %s27, %s34
      %s153 = sor.u32 %s151, %s152
      %p154 = scmp.eq.s32.totalorder %s153, 0
      %s156 = sadd.s32 %s155, 1
      %s157 = scalar_select %p154, %s155, %s156
      %p160 = pneg %p154
      %p161 = scmp.eq.s32.totalorder %s19, 1
      %p162 = por %p160, %p161
      %p163 = scmp.ne.s32.totalorder %s155, %s158
      %p164 = scmp.eq.s32.totalorder %s19, 0
      %p165 = por %p163, %p164
      %p166 = scmp.ne.s32.totalorder %s155, %s158
      %p167 = scmp.eq.s32.totalorder %s24, 1
      %p168 = por %p166, %p167
      %p169 = scmp.ne.s32.totalorder %s158, %s159
      %p170 = scmp.eq.s32.totalorder %s24, 0
      %p171 = por %p169, %p170
      %p172 = scmp.ne.s32.totalorder %s158, %s159
      %p173 = scmp.eq.s32.totalorder %s25, 1
      %p174 = por %p172, %p173
      %p176 = scmp.ne.s32.totalorder %s159, %s175
      %p177 = scmp.eq.s32.totalorder %s25, 0
      %p178 = por %p176, %p177
      %p179 = scmp.le.s32.totalorder 1, %s19
      %p180 = scmp.lt.s32.totalorder %s19, 3
      %p181 = pnand %p179, %p180
      %p182 = pneg %p181
      // Predicated region
      $region9: #{transition_layer.1} parent=5 // pred_check
        _
      $region10: #{transition_layer.1} parent=5 // pred_check_branch
        %184 = sbr.rel (%p181) target = $region12
      $region11: #{transition_layer.1} parent=5 // pred_region
        %s185 = ssub.s32 %s19, 1
        // Predicated region
        $region13: #{transition_layer.1} parent=11 // pred_check
          %p186 = pneg %p52
        $region14: #{transition_layer.1} parent=11 // pred_check_branch
          %188 = sbr.rel (%p186) target = $region16
        $region15: #{transition_layer.1} parent=11 // pred_region
          %s190 = ssub.s32 16, 16
          %191 = vsyncadd [#allocation5], %s190
          %s193 = sshll.u32 %s0, 4
          %s194 = int_to_ptr.vmem [resolvable:$true] %s193
          %196 = dma.vmem_to_smem %s194, 16, [#allocation2], [#allocation5]
        $region16: #{transition_layer.1} parent=11 // pred_fallthru
          _
        // Predicated region
        $region17: #{transition_layer.1} parent=11 // pred_check
          %p197 = pneg %p73
        $region18: #{transition_layer.1} parent=11 // pred_check_branch
          %199 = sbr.rel (%p197) target = $region20
        $region19: #{transition_layer.1} parent=11 // pred_region
          %s201 = ssub.s32 16, 16
          %202 = vsyncadd [#allocation7], %s201
          %s204 = sshll.u32 %s1, 4
          %s205 = int_to_ptr.vmem [resolvable:$true] %s204
          %207 = dma.vmem_to_smem %s205, 16, [#allocation6], [#allocation7]
        $region20: #{transition_layer.1} parent=11 // pred_fallthru
          _
        // Predicated region
        $region21: #{transition_layer.1} parent=11 // pred_check
          %p208 = pneg %p94
        $region22: #{transition_layer.1} parent=11 // pred_check_branch
          %210 = sbr.rel (%p208) target = $region24
        $region23: #{transition_layer.1} parent=11 // pred_region
          _
        $region24: #{transition_layer.1} parent=11 // pred_fallthru
          _
        // Predicated region
        $region25: #{transition_layer.1} parent=11 // pred_check
          %p211 = pneg %p115
        $region26: #{transition_layer.1} parent=11 // pred_check_branch
          %213 = sbr.rel (%p211) target = $region28
        $region27: #{transition_layer.1} parent=11 // pred_region
          _
        $region28: #{transition_layer.1} parent=11 // pred_fallthru
          _
      $region12: #{transition_layer.1} parent=5 // pred_fallthru
        _
      %p214 = scmp.lt.s32.totalorder %s19, 2
      // Predicated region
      $region29: #{transition_layer.1} parent=5 // pred_check
        %p215 = pneg %p214
      $region30: #{transition_layer.1} parent=5 // pred_check_branch
        %217 = sbr.rel (%p215) target = $region32
      $region31: #{transition_layer.1} parent=5 // pred_region
        // Predicated region
        $region33: #{transition_layer.1} parent=31 // pred_check
          %p218 = pneg %p137
        $region34: #{transition_layer.1} parent=31 // pred_check_branch
          %220 = sbr.rel (%p218) target = $region36
        $region35: #{transition_layer.1} parent=31 // pred_region
          %s221 = sand.u32 %s127, 1
          %s222 = scalar_lea.sflag [#allocation3], %s221
          %s223 = sand.u32 %s127, 1
          %s224 = smul.addr %s223, 64
          %s225 = scalar_lea.vmem [#allocation8], %s224
          %s226 = smul.u32 2, %s27
          %s228 = ssub.s32 1024, 1024
          %229 = vsyncadd %s222, %s228
          %s230 = smul.addr %s26, 8
          %s231 = sadd.s32 %s226, %s230
          %s232 = smul.addr %s231, 128
          %s233 = scalar_lea.hbm %s4, %s232
          %s234 = sshll.u32 %s225, 4
          %s235 = int_to_ptr.vmem [resolvable:$true] %s234
          %240 = dma.hbm_to_vmem [thread:$0]  %s233, 1024, %s235, %s222, 128, 128, 8
        $region36: #{transition_layer.1} parent=31 // pred_fallthru
          _
      $region32: #{transition_layer.1} parent=5 // pred_fallthru
        _
      %p241 = scmp.le.s32.totalorder 1, %s19
      %p242 = scmp.lt.s32.totalorder %s19, 3
      %p243 = pnand %p241, %p242
      %p244 = pneg %p243
      // Predicated region
      $region37: #{transition_layer.1} parent=5 // pred_check
        _
      $region38: #{transition_layer.1} parent=5 // pred_check_branch
        %246 = sbr.rel (%p243) target = $region40
      $region39: #{transition_layer.1} parent=5 // pred_region
        %s247 = ssub.s32 %s19, 1
        // Predicated region
        $region41: #{transition_layer.1} parent=39 // pred_check
          %p248 = pneg %p52
        $region42: #{transition_layer.1} parent=39 // pred_check_branch
          %250 = sbr.rel (%p248) target = $region44
        $region43: #{transition_layer.1} parent=39 // pred_region
          %251 = dma.done [#allocation5], 16
        $region44: #{transition_layer.1} parent=39 // pred_fallthru
          _
        // Predicated region
        $region45: #{transition_layer.1} parent=39 // pred_check
          %p252 = pneg %p73
        $region46: #{transition_layer.1} parent=39 // pred_check_branch
          %254 = sbr.rel (%p252) target = $region48
        $region47: #{transition_layer.1} parent=39 // pred_region
          %255 = dma.done [#allocation7], 16
        $region48: #{transition_layer.1} parent=39 // pred_fallthru
          _
        %s256 = sand.u32 %s130, 1
        %s257 = scalar_lea.sflag [#allocation3], %s256
        %s258 = sand.u32 %s130, 1
        %s259 = smul.addr %s258, 64
        %s260 = scalar_lea.vmem [#allocation8], %s259
        // Predicated region
        $region49: #{transition_layer.1} parent=39 // pred_check
          %p261 = pneg %p143
        $region50: #{transition_layer.1} parent=39 // pred_check_branch
          %263 = sbr.rel (%p261) target = $region52
        $region51: #{transition_layer.1} parent=39 // pred_region
          %264 = dma.done %s257, 1024
        $region52: #{transition_layer.1} parent=39 // pred_fallthru
          _
        %265 = sfence
        %p266 = pneg %p52
        %p267 = pneg %p49
        %p268 = pneg %p73
        %p269 = pneg %p70
        %p270 = pneg %p94
        %p271 = pneg %p91
        %p272 = pneg %p115
        %p273 = pneg %p112
        %s274 = sand.u32 %s130, 1
        %s275 = scalar_lea.sflag [#allocation3], %s274
        %s276 = sand.u32 %s130, 1
        %s277 = smul.addr %s276, 64
        %s278 = scalar_lea.vmem [#allocation8], %s277
        %p279 = pneg %p143
        %p280 = pneg %p140
        %p281 = pneg %p171
        %p282 = pneg %p168
        %s283 = sand.u32 %s158, 1
        %s284 = scalar_lea.sflag [#allocation4], %s283
        %s285 = sand.u32 %s158, 1
        %s286 = smul.addr %s285, 16
        %s287 = scalar_lea.vmem [#allocation9], %s286
        %s288 = smul.u32 2, %s29
        %v289 = vld [vmem:[%s2] sm:$0xff]
        %v290 = vld [vmem:[%s3] sm:$0xff]
        %v291 = vld [vmem:[%s3 + $0x8] sm:$0xff]
        %v292 = vld [vmem:[%s260] sm:$0xff]
        %v293 = vld [vmem:[%s260 + $0x8] sm:$0xff]
        %vm294 = vcmask 130048
        %v296 = vsel %vm294, %v289, 0
        %298 = vmatprep.subr.mxu0 0.0
        %299 = vmatpush1.msra.mxu0 0.0
        %300 = vmatprep.subr.mxu0 0.0
        %301 = vmatpush1.msra.mxu0 0.0
        %302 = vmatprep.subr.mxu0 0.0
        %303 = vmatpush1.msra.mxu0 0.0
        %304 = vmatprep.subr.mxu0 0.0
        %305 = vmatpush1.msra.mxu0 0.0
        %306 = vmatprep.subr.mxu0 0.0
        %307 = vmatpush1.msra.mxu0 0.0
        %308 = vmatprep.subr.mxu0 0.0
        %309 = vmatpush1.msra.mxu0 0.0
        %310 = vmatprep.subr.mxu0 0.0
        %311 = vmatpush1.msra.mxu0 0.0
        %312 = vmatprep.subr.mxu0 0.0
        %313 = vmatpush1.msra.mxu0 0.0
        %314 = vmatprep.subr.mxu0 0.0
        %315 = vmatpush1.msra.mxu0 0.0
        %316 = vmatprep.subr.mxu0 0.0
        %317 = vmatpush1.msra.mxu0 0.0
        %318 = vmatprep.subr.mxu0 0.0
        %319 = vmatpush1.msra.mxu0 0.0
        %320 = vmatprep.subr.mxu0 0.0
        %321 = vmatpush1.msra.mxu0 0.0
        %322 = vmatprep.subr.mxu0 0.0
        %323 = vmatpush1.msra.mxu0 0.0
        %324 = vmatprep.subr.mxu0 0.0
        %325 = vmatpush1.msra.mxu0 0.0
        %326 = vmatprep.subr.mxu0 0.0
        %327 = vmatpush1.msra.mxu0 %v293
        %328 = vmatprep.subr.mxu0 0.0
        %329 = vmatpush1.msra.mxu0 %v292
        %330 = vmatprep.subr.mxu0 0.0
        %331 = vmatpush2.msra.mxu0 0.0
        %332 = vmatprep.subr.mxu0 0.0
        %333 = vmatpush2.msra.mxu0 0.0
        %334 = vmatprep.subr.mxu0 0.0
        %335 = vmatpush2.msra.mxu0 0.0
        %336 = vmatprep.subr.mxu0 0.0
        %337 = vmatpush2.msra.mxu0 0.0
        %338 = vmatprep.subr.mxu0 0.0
        %339 = vmatpush2.msra.mxu0 0.0
        %340 = vmatprep.subr.mxu0 0.0
        %341 = vmatpush2.msra.mxu0 0.0
        %342 = vmatprep.subr.mxu0 0.0
        %343 = vmatpush2.msra.mxu0 0.0
        %344 = vmatprep.subr.mxu0 0.0
        %345 = vmatpush2.msra.mxu0 0.0
        %346 = vmatprep.subr.mxu0 0.0
        %347 = vmatpush2.msra.mxu0 0.0
        %348 = vmatprep.subr.mxu0 0.0
        %349 = vmatpush2.msra.mxu0 0.0
        %350 = vmatprep.subr.mxu0 0.0
        %351 = vmatpush2.msra.mxu0 0.0
        %352 = vmatprep.subr.mxu0 0.0
        %353 = vmatpush2.msra.mxu0 0.0
        %354 = vmatprep.subr.mxu0 0.0
        %355 = vmatpush2.msra.mxu0 0.0
        %356 = vmatprep.subr.mxu0 0.0
        %357 = vmatpush2.msra.mxu0 0.0
        %358 = vmatprep.subr.mxu0 0.0
        %359 = vmatpush2.msra.mxu0 0.0
        %360 = vmatprep.subr.mxu0 0.0
        %361 = vmatpush2.msra.mxu0 0.0
        %362 = vmatprep.mubr.f32.mxu0 0.0
        %363 = vmatmul.mubr.f32.gmra.mxu0 %v296
        %v364 = vpop.f32.mrf.mxu0
        %v365 = vadd.f32 0.0, %v364
        %v366 = vpop.f32.mrf.mxu0
        %367 = vdwg.mxu0
        %v369 = vsel %vm294, %v365, 0
        %371 = vmatprep.subr.mxu0 0.0
        %372 = vmatpush1.msra.mxu0 0.0
        %373 = vmatprep.subr.mxu0 0.0
        %374 = vmatpush1.msra.mxu0 0.0
        %375 = vmatprep.subr.mxu0 0.0
        %376 = vmatpush1.msra.mxu0 0.0
        %377 = vmatprep.subr.mxu0 0.0
        %378 = vmatpush1.msra.mxu0 0.0
        %379 = vmatprep.subr.mxu0 0.0
        %380 = vmatpush1.msra.mxu0 0.0
        %381 = vmatprep.subr.mxu0 0.0
        %382 = vmatpush1.msra.mxu0 0.0
        %383 = vmatprep.subr.mxu0 0.0
        %384 = vmatpush1.msra.mxu0 0.0
        %385 = vmatprep.subr.mxu0 0.0
        %386 = vmatpush1.msra.mxu0 0.0
        %387 = vmatprep.subr.mxu0 0.0
        %388 = vmatpush1.msra.mxu0 0.0
        %389 = vmatprep.subr.mxu0 0.0
        %390 = vmatpush1.msra.mxu0 0.0
        %391 = vmatprep.subr.mxu0 0.0
        %392 = vmatpush1.msra.mxu0 0.0
        %393 = vmatprep.subr.mxu0 0.0
        %394 = vmatpush1.msra.mxu0 0.0
        %395 = vmatprep.subr.mxu0 0.0
        %396 = vmatpush1.msra.mxu0 0.0
        %397 = vmatprep.subr.mxu0 0.0
        %398 = vmatpush1.msra.mxu0 0.0
        %399 = vmatprep.subr.mxu0 0.0
        %400 = vmatpush1.msra.mxu0 %v291
        %401 = vmatprep.subr.mxu0 0.0
        %402 = vmatpush1.msra.mxu0 %v290
        %403 = vmatprep.subr.mxu0 0.0
        %404 = vmatpush2.msra.mxu0 0.0
        %405 = vmatprep.subr.mxu0 0.0
        %406 = vmatpush2.msra.mxu0 0.0
        %407 = vmatprep.subr.mxu0 0.0
        %408 = vmatpush2.msra.mxu0 0.0
        %409 = vmatprep.subr.mxu0 0.0
        %410 = vmatpush2.msra.mxu0 0.0
        %411 = vmatprep.subr.mxu0 0.0
        %412 = vmatpush2.msra.mxu0 0.0
        %413 = vmatprep.subr.mxu0 0.0
        %414 = vmatpush2.msra.mxu0 0.0
        %415 = vmatprep.subr.mxu0 0.0
        %416 = vmatpush2.msra.mxu0 0.0
        %417 = vmatprep.subr.mxu0 0.0
        %418 = vmatpush2.msra.mxu0 0.0
        %419 = vmatprep.subr.mxu0 0.0
        %420 = vmatpush2.msra.mxu0 0.0
        %421 = vmatprep.subr.mxu0 0.0
        %422 = vmatpush2.msra.mxu0 0.0
        %423 = vmatprep.subr.mxu0 0.0
        %424 = vmatpush2.msra.mxu0 0.0
        %425 = vmatprep.subr.mxu0 0.0
        %426 = vmatpush2.msra.mxu0 0.0
        %427 = vmatprep.subr.mxu0 0.0
        %428 = vmatpush2.msra.mxu0 0.0
        %429 = vmatprep.subr.mxu0 0.0
        %430 = vmatpush2.msra.mxu0 0.0
        %431 = vmatprep.subr.mxu0 0.0
        %432 = vmatpush2.msra.mxu0 0.0
        %433 = vmatprep.subr.mxu0 0.0
        %434 = vmatpush2.msra.mxu0 0.0
        %435 = vmatprep.mubr.f32.mxu0 0.0
        %436 = vmatmul.mubr.f32.gmra.mxu0 %v369
        %v437 = vpop.f32.mrf.mxu0
        %v438 = vadd.f32 0.0, %v437
        %v439 = vpop.f32.mrf.mxu0
        %440 = vdwg.mxu0
        %s441 = scalar_lea.vmem %s260, 16 [#allocation8]
        %v442 = vld [vmem:[%s441] sm:$0xff]
        %v443 = vld [vmem:[%s441 + $0x8] sm:$0xff]
        %444 = vmatprep.subr.mxu0 0.0
        %445 = vmatpush1.msra.mxu0 0.0
        %446 = vmatprep.subr.mxu0 0.0
        %447 = vmatpush1.msra.mxu0 0.0
        %448 = vmatprep.subr.mxu0 0.0
        %449 = vmatpush1.msra.mxu0 0.0
        %450 = vmatprep.subr.mxu0 0.0
        %451 = vmatpush1.msra.mxu0 0.0
        %452 = vmatprep.subr.mxu0 0.0
        %453 = vmatpush1.msra.mxu0 0.0
        %454 = vmatprep.subr.mxu0 0.0
        %455 = vmatpush1.msra.mxu0 0.0
        %456 = vmatprep.subr.mxu0 0.0
        %457 = vmatpush1.msra.mxu0 0.0
        %458 = vmatprep.subr.mxu0 0.0
        %459 = vmatpush1.msra.mxu0 0.0
        %460 = vmatprep.subr.mxu0 0.0
        %461 = vmatpush1.msra.mxu0 0.0
        %462 = vmatprep.subr.mxu0 0.0
        %463 = vmatpush1.msra.mxu0 0.0
        %464 = vmatprep.subr.mxu0 0.0
        %465 = vmatpush1.msra.mxu0 0.0
        %466 = vmatprep.subr.mxu0 0.0
        %467 = vmatpush1.msra.mxu0 0.0
        %468 = vmatprep.subr.mxu0 0.0
        %469 = vmatpush1.msra.mxu0 0.0
        %470 = vmatprep.subr.mxu0 0.0
        %471 = vmatpush1.msra.mxu0 0.0
        %472 = vmatprep.subr.mxu0 0.0
        %473 = vmatpush1.msra.mxu0 %v443
        %474 = vmatprep.subr.mxu0 0.0
        %475 = vmatpush1.msra.mxu0 %v442
        %476 = vmatprep.subr.mxu0 0.0
        %477 = vmatpush2.msra.mxu0 0.0
        %478 = vmatprep.subr.mxu0 0.0
        %479 = vmatpush2.msra.mxu0 0.0
        %480 = vmatprep.subr.mxu0 0.0
        %481 = vmatpush2.msra.mxu0 0.0
        %482 = vmatprep.subr.mxu0 0.0
        %483 = vmatpush2.msra.mxu0 0.0
        %484 = vmatprep.subr.mxu0 0.0
        %485 = vmatpush2.msra.mxu0 0.0
        %486 = vmatprep.subr.mxu0 0.0
        %487 = vmatpush2.msra.mxu0 0.0
        %488 = vmatprep.subr.mxu0 0.0
        %489 = vmatpush2.msra.mxu0 0.0
        %490 = vmatprep.subr.mxu0 0.0
        %491 = vmatpush2.msra.mxu0 0.0
        %492 = vmatprep.subr.mxu0 0.0
        %493 = vmatpush2.msra.mxu0 0.0
        %494 = vmatprep.subr.mxu0 0.0
        %495 = vmatpush2.msra.mxu0 0.0
        %496 = vmatprep.subr.mxu0 0.0
        %497 = vmatpush2.msra.mxu0 0.0
        %498 = vmatprep.subr.mxu0 0.0
        %499 = vmatpush2.msra.mxu0 0.0
        %500 = vmatprep.subr.mxu0 0.0
        %501 = vmatpush2.msra.mxu0 0.0
        %502 = vmatprep.subr.mxu0 0.0
        %503 = vmatpush2.msra.mxu0 0.0
        %504 = vmatprep.subr.mxu0 0.0
        %505 = vmatpush2.msra.mxu0 0.0
        %506 = vmatprep.subr.mxu0 0.0
        %507 = vmatpush2.msra.mxu0 0.0
        %508 = vmatprep.mubr.f32.mxu0 0.0
        %509 = vmatmul.mubr.f32.gmra.mxu0 %v296
        %v510 = vpop.f32.mrf.mxu0
        %v511 = vadd.f32 0.0, %v510
        %v512 = vpop.f32.mrf.mxu0
        %513 = vdwg.mxu0
        %v515 = vsel %vm294, %v511, 0
        %517 = vmatprep.subr.mxu0 0.0
        %518 = vmatpush1.msra.mxu0 0.0
        %519 = vmatprep.subr.mxu0 0.0
        %520 = vmatpush1.msra.mxu0 0.0
        %521 = vmatprep.subr.mxu0 0.0
        %522 = vmatpush1.msra.mxu0 0.0
        %523 = vmatprep.subr.mxu0 0.0
        %524 = vmatpush1.msra.mxu0 0.0
        %525 = vmatprep.subr.mxu0 0.0
        %526 = vmatpush1.msra.mxu0 0.0
        %527 = vmatprep.subr.mxu0 0.0
        %528 = vmatpush1.msra.mxu0 0.0
        %529 = vmatprep.subr.mxu0 0.0
        %530 = vmatpush1.msra.mxu0 0.0
        %531 = vmatprep.subr.mxu0 0.0
        %532 = vmatpush1.msra.mxu0 0.0
        %533 = vmatprep.subr.mxu0 0.0
        %534 = vmatpush1.msra.mxu0 0.0
        %535 = vmatprep.subr.mxu0 0.0
        %536 = vmatpush1.msra.mxu0 0.0
        %537 = vmatprep.subr.mxu0 0.0
        %538 = vmatpush1.msra.mxu0 0.0
        %539 = vmatprep.subr.mxu0 0.0
        %540 = vmatpush1.msra.mxu0 0.0
        %541 = vmatprep.subr.mxu0 0.0
        %542 = vmatpush1.msra.mxu0 0.0
        %543 = vmatprep.subr.mxu0 0.0
        %544 = vmatpush1.msra.mxu0 0.0
        %545 = vmatprep.subr.mxu0 0.0
        %546 = vmatpush1.msra.mxu0 %v291
        %547 = vmatprep.subr.mxu0 0.0
        %548 = vmatpush1.msra.mxu0 %v290
        %549 = vmatprep.subr.mxu0 0.0
        %550 = vmatpush2.msra.mxu0 0.0
        %551 = vmatprep.subr.mxu0 0.0
        %552 = vmatpush2.msra.mxu0 0.0
        %553 = vmatprep.subr.mxu0 0.0
        %554 = vmatpush2.msra.mxu0 0.0
        %555 = vmatprep.subr.mxu0 0.0
        %556 = vmatpush2.msra.mxu0 0.0
        %557 = vmatprep.subr.mxu0 0.0
        %558 = vmatpush2.msra.mxu0 0.0
        %559 = vmatprep.subr.mxu0 0.0
        %560 = vmatpush2.msra.mxu0 0.0
        %561 = vmatprep.subr.mxu0 0.0
        %562 = vmatpush2.msra.mxu0 0.0
        %563 = vmatprep.subr.mxu0 0.0
        %564 = vmatpush2.msra.mxu0 0.0
        %565 = vmatprep.subr.mxu0 0.0
        %566 = vmatpush2.msra.mxu0 0.0
        %567 = vmatprep.subr.mxu0 0.0
        %568 = vmatpush2.msra.mxu0 0.0
        %569 = vmatprep.subr.mxu0 0.0
        %570 = vmatpush2.msra.mxu0 0.0
        %571 = vmatprep.subr.mxu0 0.0
        %572 = vmatpush2.msra.mxu0 0.0
        %573 = vmatprep.subr.mxu0 0.0
        %574 = vmatpush2.msra.mxu0 0.0
        %575 = vmatprep.subr.mxu0 0.0
        %576 = vmatpush2.msra.mxu0 0.0
        %577 = vmatprep.subr.mxu0 0.0
        %578 = vmatpush2.msra.mxu0 0.0
        %579 = vmatprep.subr.mxu0 0.0
        %580 = vmatpush2.msra.mxu0 0.0
        %581 = vmatprep.mubr.f32.mxu0 0.0
        %582 = vmatmul.mubr.f32.gmra.mxu0 %v515
        %v583 = vpop.f32.mrf.mxu0
        %v584 = vadd.f32 0.0, %v583
        %v585 = vpop.f32.mrf.mxu0
        %586 = vdwg.mxu0
        %s587 = scalar_lea.vmem %s260, 32 [#allocation8]
        %v588 = vld [vmem:[%s587] sm:$0xff]
        %v589 = vld [vmem:[%s587 + $0x8] sm:$0xff]
        %590 = vmatprep.subr.mxu0 0.0
        %591 = vmatpush1.msra.mxu0 0.0
        %592 = vmatprep.subr.mxu0 0.0
        %593 = vmatpush1.msra.mxu0 0.0
        %594 = vmatprep.subr.mxu0 0.0
        %595 = vmatpush1.msra.mxu0 0.0
        %596 = vmatprep.subr.mxu0 0.0
        %597 = vmatpush1.msra.mxu0 0.0
        %598 = vmatprep.subr.mxu0 0.0
        %599 = vmatpush1.msra.mxu0 0.0
        %600 = vmatprep.subr.mxu0 0.0
        %601 = vmatpush1.msra.mxu0 0.0
        %602 = vmatprep.subr.mxu0 0.0
        %603 = vmatpush1.msra.mxu0 0.0
        %604 = vmatprep.subr.mxu0 0.0
        %605 = vmatpush1.msra.mxu0 0.0
        %606 = vmatprep.subr.mxu0 0.0
        %607 = vmatpush1.msra.mxu0 0.0
        %608 = vmatprep.subr.mxu0 0.0
        %609 = vmatpush1.msra.mxu0 0.0
        %610 = vmatprep.subr.mxu0 0.0
        %611 = vmatpush1.msra.mxu0 0.0
        %612 = vmatprep.subr.mxu0 0.0
        %613 = vmatpush1.msra.mxu0 0.0
        %614 = vmatprep.subr.mxu0 0.0
        %615 = vmatpush1.msra.mxu0 0.0
        %616 = vmatprep.subr.mxu0 0.0
        %617 = vmatpush1.msra.mxu0 0.0
        %618 = vmatprep.subr.mxu0 0.0
        %619 = vmatpush1.msra.mxu0 %v589
        %620 = vmatprep.subr.mxu0 0.0
        %621 = vmatpush1.msra.mxu0 %v588
        %622 = vmatprep.subr.mxu0 0.0
        %623 = vmatpush2.msra.mxu0 0.0
        %624 = vmatprep.subr.mxu0 0.0
        %625 = vmatpush2.msra.mxu0 0.0
        %626 = vmatprep.subr.mxu0 0.0
        %627 = vmatpush2.msra.mxu0 0.0
        %628 = vmatprep.subr.mxu0 0.0
        %629 = vmatpush2.msra.mxu0 0.0
        %630 = vmatprep.subr.mxu0 0.0
        %631 = vmatpush2.msra.mxu0 0.0
        %632 = vmatprep.subr.mxu0 0.0
        %633 = vmatpush2.msra.mxu0 0.0
        %634 = vmatprep.subr.mxu0 0.0
        %635 = vmatpush2.msra.mxu0 0.0
        %636 = vmatprep.subr.mxu0 0.0
        %637 = vmatpush2.msra.mxu0 0.0
        %638 = vmatprep.subr.mxu0 0.0
        %639 = vmatpush2.msra.mxu0 0.0
        %640 = vmatprep.subr.mxu0 0.0
        %641 = vmatpush2.msra.mxu0 0.0
        %642 = vmatprep.subr.mxu0 0.0
        %643 = vmatpush2.msra.mxu0 0.0
        %644 = vmatprep.subr.mxu0 0.0
        %645 = vmatpush2.msra.mxu0 0.0
        %646 = vmatprep.subr.mxu0 0.0
        %647 = vmatpush2.msra.mxu0 0.0
        %648 = vmatprep.subr.mxu0 0.0
        %649 = vmatpush2.msra.mxu0 0.0
        %650 = vmatprep.subr.mxu0 0.0
        %651 = vmatpush2.msra.mxu0 0.0
        %652 = vmatprep.subr.mxu0 0.0
        %653 = vmatpush2.msra.mxu0 0.0
        %654 = vmatprep.mubr.f32.mxu0 0.0
        %655 = vmatmul.mubr.f32.gmra.mxu0 %v296
        %v656 = vpop.f32.mrf.mxu0
        %v657 = vadd.f32 0.0, %v656
        %v658 = vpop.f32.mrf.mxu0
        %659 = vdwg.mxu0
        %v661 = vsel %vm294, %v657, 0
        %663 = vmatprep.subr.mxu0 0.0
        %664 = vmatpush1.msra.mxu0 0.0
        %665 = vmatprep.subr.mxu0 0.0
        %666 = vmatpush1.msra.mxu0 0.0
        %667 = vmatprep.subr.mxu0 0.0
        %668 = vmatpush1.msra.mxu0 0.0
        %669 = vmatprep.subr.mxu0 0.0
        %670 = vmatpush1.msra.mxu0 0.0
        %671 = vmatprep.subr.mxu0 0.0
        %672 = vmatpush1.msra.mxu0 0.0
        %673 = vmatprep.subr.mxu0 0.0
        %674 = vmatpush1.msra.mxu0 0.0
        %675 = vmatprep.subr.mxu0 0.0
        %676 = vmatpush1.msra.mxu0 0.0
        %677 = vmatprep.subr.mxu0 0.0
        %678 = vmatpush1.msra.mxu0 0.0
        %679 = vmatprep.subr.mxu0 0.0
        %680 = vmatpush1.msra.mxu0 0.0
        %681 = vmatprep.subr.mxu0 0.0
        %682 = vmatpush1.msra.mxu0 0.0
        %683 = vmatprep.subr.mxu0 0.0
        %684 = vmatpush1.msra.mxu0 0.0
        %685 = vmatprep.subr.mxu0 0.0
        %686 = vmatpush1.msra.mxu0 0.0
        %687 = vmatprep.subr.mxu0 0.0
        %688 = vmatpush1.msra.mxu0 0.0
        %689 = vmatprep.subr.mxu0 0.0
        %690 = vmatpush1.msra.mxu0 0.0
        %691 = vmatprep.subr.mxu0 0.0
        %692 = vmatpush1.msra.mxu0 %v291
        %693 = vmatprep.subr.mxu0 0.0
        %694 = vmatpush1.msra.mxu0 %v290
        %695 = vmatprep.subr.mxu0 0.0
        %696 = vmatpush2.msra.mxu0 0.0
        %697 = vmatprep.subr.mxu0 0.0
        %698 = vmatpush2.msra.mxu0 0.0
        %699 = vmatprep.subr.mxu0 0.0
        %700 = vmatpush2.msra.mxu0 0.0
        %701 = vmatprep.subr.mxu0 0.0
        %702 = vmatpush2.msra.mxu0 0.0
        %703 = vmatprep.subr.mxu0 0.0
        %704 = vmatpush2.msra.mxu0 0.0
        %705 = vmatprep.subr.mxu0 0.0
        %706 = vmatpush2.msra.mxu0 0.0
        %707 = vmatprep.subr.mxu0 0.0
        %708 = vmatpush2.msra.mxu0 0.0
        %709 = vmatprep.subr.mxu0 0.0
        %710 = vmatpush2.msra.mxu0 0.0
        %711 = vmatprep.subr.mxu0 0.0
        %712 = vmatpush2.msra.mxu0 0.0
        %713 = vmatprep.subr.mxu0 0.0
        %714 = vmatpush2.msra.mxu0 0.0
        %715 = vmatprep.subr.mxu0 0.0
        %716 = vmatpush2.msra.mxu0 0.0
        %717 = vmatprep.subr.mxu0 0.0
        %718 = vmatpush2.msra.mxu0 0.0
        %719 = vmatprep.subr.mxu0 0.0
        %720 = vmatpush2.msra.mxu0 0.0
        %721 = vmatprep.subr.mxu0 0.0
        %722 = vmatpush2.msra.mxu0 0.0
        %723 = vmatprep.subr.mxu0 0.0
        %724 = vmatpush2.msra.mxu0 0.0
        %725 = vmatprep.subr.mxu0 0.0
        %726 = vmatpush2.msra.mxu0 0.0
        %727 = vmatprep.mubr.f32.mxu0 0.0
        %728 = vmatmul.mubr.f32.gmra.mxu0 %v661
        %v729 = vpop.f32.mrf.mxu0
        %v730 = vadd.f32 0.0, %v729
        %v731 = vpop.f32.mrf.mxu0
        %732 = vdwg.mxu0
        %s733 = scalar_lea.vmem %s260, 48 [#allocation8]
        %v734 = vld [vmem:[%s733] sm:$0xff]
        %v735 = vld [vmem:[%s733 + $0x8] sm:$0xff]
        %736 = vmatprep.subr.mxu0 0.0
        %737 = vmatpush1.msra.mxu0 0.0
        %738 = vmatprep.subr.mxu0 0.0
        %739 = vmatpush1.msra.mxu0 0.0
        %740 = vmatprep.subr.mxu0 0.0
        %741 = vmatpush1.msra.mxu0 0.0
        %742 = vmatprep.subr.mxu0 0.0
        %743 = vmatpush1.msra.mxu0 0.0
        %744 = vmatprep.subr.mxu0 0.0
        %745 = vmatpush1.msra.mxu0 0.0
        %746 = vmatprep.subr.mxu0 0.0
        %747 = vmatpush1.msra.mxu0 0.0
        %748 = vmatprep.subr.mxu0 0.0
        %749 = vmatpush1.msra.mxu0 0.0
        %750 = vmatprep.subr.mxu0 0.0
        %751 = vmatpush1.msra.mxu0 0.0
        %752 = vmatprep.subr.mxu0 0.0
        %753 = vmatpush1.msra.mxu0 0.0
        %754 = vmatprep.subr.mxu0 0.0
        %755 = vmatpush1.msra.mxu0 0.0
        %756 = vmatprep.subr.mxu0 0.0
        %757 = vmatpush1.msra.mxu0 0.0
        %758 = vmatprep.subr.mxu0 0.0
        %759 = vmatpush1.msra.mxu0 0.0
        %760 = vmatprep.subr.mxu0 0.0
        %761 = vmatpush1.msra.mxu0 0.0
        %762 = vmatprep.subr.mxu0 0.0
        %763 = vmatpush1.msra.mxu0 0.0
        %764 = vmatprep.subr.mxu0 0.0
        %765 = vmatpush1.msra.mxu0 %v735
        %766 = vmatprep.subr.mxu0 0.0
        %767 = vmatpush1.msra.mxu0 %v734
        %768 = vmatprep.subr.mxu0 0.0
        %769 = vmatpush2.msra.mxu0 0.0
        %770 = vmatprep.subr.mxu0 0.0
        %771 = vmatpush2.msra.mxu0 0.0
        %772 = vmatprep.subr.mxu0 0.0
        %773 = vmatpush2.msra.mxu0 0.0
        %774 = vmatprep.subr.mxu0 0.0
        %775 = vmatpush2.msra.mxu0 0.0
        %776 = vmatprep.subr.mxu0 0.0
        %777 = vmatpush2.msra.mxu0 0.0
        %778 = vmatprep.subr.mxu0 0.0
        %779 = vmatpush2.msra.mxu0 0.0
        %780 = vmatprep.subr.mxu0 0.0
        %781 = vmatpush2.msra.mxu0 0.0
        %782 = vmatprep.subr.mxu0 0.0
        %783 = vmatpush2.msra.mxu0 0.0
        %784 = vmatprep.subr.mxu0 0.0
        %785 = vmatpush2.msra.mxu0 0.0
        %786 = vmatprep.subr.mxu0 0.0
        %787 = vmatpush2.msra.mxu0 0.0
        %788 = vmatprep.subr.mxu0 0.0
        %789 = vmatpush2.msra.mxu0 0.0
        %790 = vmatprep.subr.mxu0 0.0
        %791 = vmatpush2.msra.mxu0 0.0
        %792 = vmatprep.subr.mxu0 0.0
        %793 = vmatpush2.msra.mxu0 0.0
        %794 = vmatprep.subr.mxu0 0.0
        %795 = vmatpush2.msra.mxu0 0.0
        %796 = vmatprep.subr.mxu0 0.0
        %797 = vmatpush2.msra.mxu0 0.0
        %798 = vmatprep.subr.mxu0 0.0
        %799 = vmatpush2.msra.mxu0 0.0
        %800 = vmatprep.mubr.f32.mxu0 0.0
        %801 = vmatmul.mubr.f32.gmra.mxu0 %v296
        %v802 = vpop.f32.mrf.mxu0
        %v803 = vadd.f32 0.0, %v802
        %v804 = vpop.f32.mrf.mxu0
        %805 = vdwg.mxu0
        %v807 = vsel %vm294, %v803, 0
        %809 = vmatprep.subr.mxu0 0.0
        %810 = vmatpush1.msra.mxu0 0.0
        %811 = vmatprep.subr.mxu0 0.0
        %812 = vmatpush1.msra.mxu0 0.0
        %813 = vmatprep.subr.mxu0 0.0
        %814 = vmatpush1.msra.mxu0 0.0
        %815 = vmatprep.subr.mxu0 0.0
        %816 = vmatpush1.msra.mxu0 0.0
        %817 = vmatprep.subr.mxu0 0.0
        %818 = vmatpush1.msra.mxu0 0.0
        %819 = vmatprep.subr.mxu0 0.0
        %820 = vmatpush1.msra.mxu0 0.0
        %821 = vmatprep.subr.mxu0 0.0
        %822 = vmatpush1.msra.mxu0 0.0
        %823 = vmatprep.subr.mxu0 0.0
        %824 = vmatpush1.msra.mxu0 0.0
        %825 = vmatprep.subr.mxu0 0.0
        %826 = vmatpush1.msra.mxu0 0.0
        %827 = vmatprep.subr.mxu0 0.0
        %828 = vmatpush1.msra.mxu0 0.0
        %829 = vmatprep.subr.mxu0 0.0
        %830 = vmatpush1.msra.mxu0 0.0
        %831 = vmatprep.subr.mxu0 0.0
        %832 = vmatpush1.msra.mxu0 0.0
        %833 = vmatprep.subr.mxu0 0.0
        %834 = vmatpush1.msra.mxu0 0.0
        %835 = vmatprep.subr.mxu0 0.0
        %836 = vmatpush1.msra.mxu0 0.0
        %837 = vmatprep.subr.mxu0 0.0
        %838 = vmatpush1.msra.mxu0 %v291
        %839 = vmatprep.subr.mxu0 0.0
        %840 = vmatpush1.msra.mxu0 %v290
        %841 = vmatprep.subr.mxu0 0.0
        %842 = vmatpush2.msra.mxu0 0.0
        %843 = vmatprep.subr.mxu0 0.0
        %844 = vmatpush2.msra.mxu0 0.0
        %845 = vmatprep.subr.mxu0 0.0
        %846 = vmatpush2.msra.mxu0 0.0
        %847 = vmatprep.subr.mxu0 0.0
        %848 = vmatpush2.msra.mxu0 0.0
        %849 = vmatprep.subr.mxu0 0.0
        %850 = vmatpush2.msra.mxu0 0.0
        %851 = vmatprep.subr.mxu0 0.0
        %852 = vmatpush2.msra.mxu0 0.0
        %853 = vmatprep.subr.mxu0 0.0
        %854 = vmatpush2.msra.mxu0 0.0
        %855 = vmatprep.subr.mxu0 0.0
        %856 = vmatpush2.msra.mxu0 0.0
        %857 = vmatprep.subr.mxu0 0.0
        %858 = vmatpush2.msra.mxu0 0.0
        %859 = vmatprep.subr.mxu0 0.0
        %860 = vmatpush2.msra.mxu0 0.0
        %861 = vmatprep.subr.mxu0 0.0
        %862 = vmatpush2.msra.mxu0 0.0
        %863 = vmatprep.subr.mxu0 0.0
        %864 = vmatpush2.msra.mxu0 0.0
        %865 = vmatprep.subr.mxu0 0.0
        %866 = vmatpush2.msra.mxu0 0.0
        %867 = vmatprep.subr.mxu0 0.0
        %868 = vmatpush2.msra.mxu0 0.0
        %869 = vmatprep.subr.mxu0 0.0
        %870 = vmatpush2.msra.mxu0 0.0
        %871 = vmatprep.subr.mxu0 0.0
        %872 = vmatpush2.msra.mxu0 0.0
        %873 = vmatprep.mubr.f32.mxu0 0.0
        %874 = vmatmul.mubr.f32.gmra.mxu0 %v807
        %v875 = vpop.f32.mrf.mxu0
        %v876 = vadd.f32 0.0, %v875
        %v877 = vpop.f32.mrf.mxu0
        %878 = vdwg.mxu0
        %s879 = sld [smem:[#allocation2]]
        %v880 = vstv %s879
        %v881 = vmul.f32 %v880, %v438
        %s882 = sld [smem:[#allocation2 + $0x1]]
        %v883 = vstv %s882
        %v884 = vmul.f32 %v883, %v584
        %v885 = vadd.f32 %v881, %v884
        %s886 = sld [smem:[#allocation2 + $0x2]]
        %v887 = vstv %s886
        %v888 = vmul.f32 %v887, %v730
        %v889 = vadd.f32 %v885, %v888
        %s890 = sld [smem:[#allocation2 + $0x3]]
        %v891 = vstv %s890
        %v892 = vmul.f32 %v891, %v876
        %v893 = vadd.f32 %v889, %v892
        %v894 = vmul.f32 %v893, 0.25
        %s895 = sld [smem:[#allocation6]]
        %v896 = vstv %s895
        %v897 = vadd.f32 %v894, %v896
        %vm898 = vcmask 64512
        %899 = vst.msk [vmem:[%s287] sm:$0xff] %vm898, %v897
        %s900 = sld [smem:[#allocation2 + $0x4]]
        %v901 = vstv %s900
        %v902 = vmul.f32 %v901, %v438
        %s903 = sld [smem:[#allocation2 + $0x5]]
        %v904 = vstv %s903
        %v905 = vmul.f32 %v904, %v584
        %v906 = vadd.f32 %v902, %v905
        %s907 = sld [smem:[#allocation2 + $0x6]]
        %v908 = vstv %s907
        %v909 = vmul.f32 %v908, %v730
        %v910 = vadd.f32 %v906, %v909
        %s911 = sld [smem:[#allocation2 + $0x7]]
        %v912 = vstv %s911
        %v913 = vmul.f32 %v912, %v876
        %v914 = vadd.f32 %v910, %v913
        %v915 = vmul.f32 %v914, 0.25
        %s916 = sld [smem:[#allocation6 + $0x1]]
        %v917 = vstv %s916
        %v918 = vadd.f32 %v915, %v917
        %s919 = scalar_lea.vmem %s287, 8 [#allocation9]
        %920 = vst.msk [vmem:[%s919] sm:$0xff] %vm898, %v918
        %s921 = sand.u32 %s158, 1
        %s922 = scalar_lea.sflag [#allocation4], %s921
        %s923 = sand.u32 %s158, 1
        %s924 = smul.addr %s923, 16
        %s925 = scalar_lea.vmem [#allocation9], %s924
        // Predicated region
        $region53: #{transition_layer.1} parent=39 // pred_check
          %p926 = pneg %p168
        $region54: #{transition_layer.1} parent=39 // pred_check_branch
          %928 = sbr.rel (%p926) target = $region56
        $region55: #{transition_layer.1} parent=39 // pred_region
          %s930 = ssub.s32 256, 256
          %931 = vsyncadd %s922, %s930
          %s932 = smul.addr %s28, 2
          %s933 = sadd.s32 %s29, %s932
          %s934 = smul.addr %s933, 128
          %s935 = scalar_lea.hbm %s5, %s934
          %s936 = sshll.u32 %s925, 4
          %s937 = int_to_ptr.vmem [resolvable:$true] %s936
          %942 = dma.vmem_to_hbm [thread:$0]  %s937, 256, %s935, %s922, 128, 128, 8
        $region56: #{transition_layer.1} parent=39 // pred_fallthru
          _
      $region40: #{transition_layer.1} parent=5 // pred_fallthru
        _
      %p943 = scmp.le.s32.totalorder 2, %s19
      // Predicated region
      $region57: #{transition_layer.1} parent=5 // pred_check
        %p944 = pneg %p943
      $region58: #{transition_layer.1} parent=5 // pred_check_branch
        %946 = sbr.rel (%p944) target = $region60
      $region59: #{transition_layer.1} parent=5 // pred_region
        %s947 = ssub.s32 %s19, 2
        // Predicated region
        $region61: #{transition_layer.1} parent=59 // pred_check
          %p948 = pneg %p174
        $region62: #{transition_layer.1} parent=59 // pred_check_branch
          %950 = sbr.rel (%p948) target = $region64
        $region63: #{transition_layer.1} parent=59 // pred_region
          %s951 = sand.u32 %s159, 1
          %s952 = scalar_lea.sflag [#allocation4], %s951
          %s953 = sand.u32 %s159, 1
          %s954 = smul.addr %s953, 16
          %s955 = scalar_lea.vmem [#allocation9], %s954
          %956 = dma.done %s952, 256
        $region64: #{transition_layer.1} parent=59 // pred_fallthru
          _
      $region60: #{transition_layer.1} parent=5 // pred_fallthru
        _
    $region6: #{transition_layer.1} parent=1 // loop_footer
      %s23 = sadd.s32 1, %s19
    $region7: #{transition_layer.1} parent=1 // loop_footer_branch
      %18 = sbr.rel target = $region3
    $region8: #{transition_layer.1} parent=1 // loop_exit
      _
    %957 = vsyncpa [#allocation3], 1
    %s958 = scalar_lea.sflag [#allocation3], 1
    %959 = vsyncpa %s958, 1
    %960 = vsyncpa [#allocation4], 1
    %s961 = scalar_lea.sflag [#allocation4], 1
    %962 = vsyncpa %s961, 1
    %963 = vsyncpa [#allocation5], 1
    %s964 = scalar_lea.sflag [#allocation5], 1
    %965 = vsyncpa %s964, 1
    %966 = vsyncpa [#allocation7], 1

</llo_original>
